<compile_context>
chip_gen: v7x
topology: tpu7x:2x2x1
jax: 0.10.0
libtpu: 0.0.40
codegen_flags: <defaults>
</compile_context>

<pallas_src>
import functools

import jax
import jax.numpy as jnp
import numpy as np
from jax import lax
from jax.experimental import pallas as pl
from jax.experimental.pallas import tpu as pltpu

LEAKY_SLOPE = 0.01
BN_EPS = 1e-5


def _round_up(x, m):
    return ((x + m - 1) // m) * m


def _conv_bn_lrelu_kernel(lhs_ref, w_ref, grp_ref, affine_ref, o_ref, *,
                          count, chunk, n_chunks):
    """Fused conv-as-matmul (16-pixel lane packing) + train-mode BN + LeakyReLU.

    lhs_ref    : (rows, Kp) f32  packed im2col patches (G pixels per row)
    w_ref      : (Kp, Cp)  f32  block-diagonal conv weight (kron(I_G, W))
    grp_ref    : (Cp, Cp)  f32  lane-group reduce+broadcast matrix
    affine_ref : (2,  Cp)  f32  row 0 = gamma (tiled Gx), row 1 = beta
    o_ref      : (rows, Cp) f32 lane-dense output slab
    count      : static int    real BN population = N * Ho * Wo
    chunk      : static int    rows processed per pass-1/pass-2 step
    n_chunks   : static int    rows // chunk
    """
    cp = o_ref.shape[1]

    # ---- pass 1: chunked conv matmul + one-pass stats; stage raw y in o_ref.
    s1 = jnp.zeros((1, cp), jnp.float32)
    s2 = jnp.zeros((1, cp), jnp.float32)
    for c in range(n_chunks):
        rs = pl.multiple_of(c * chunk, chunk)
        yc = jnp.dot(lhs_ref[pl.ds(rs, chunk), :], w_ref[...],
                     preferred_element_type=jnp.float32)
        s1 = s1 + jnp.sum(yc, axis=0, keepdims=True)
        s2 = s2 + jnp.sum(yc * yc, axis=0, keepdims=True)
        o_ref[pl.ds(rs, chunk), :] = yc

    # ---- per-channel totals: reduce over the lane groups and broadcast back
    # to all 128 lanes with one small MXU matmul (keeps it off the VALU).
    tot1 = jnp.dot(s1, grp_ref[...], preferred_element_type=jnp.float32)
    tot2 = jnp.dot(s2, grp_ref[...], preferred_element_type=jnp.float32)

    inv_n = jnp.float32(1.0 / count)
    mean = tot1 * inv_n                                          # (1, Cp)
    var = jnp.maximum(tot2 * inv_n - mean * mean, 0.0)           # clamp >= 0

    gamma = affine_ref[0:1, :]
    beta = affine_ref[1:2, :]
    scale = gamma * lax.rsqrt(var + BN_EPS)                      # (1, Cp)
    shift = beta - mean * scale

    # ---- pass 2: re-read staged y, apply BN affine + LeakyReLU, overwrite.
    for c in range(n_chunks):
        rs = pl.multiple_of(c * chunk, chunk)
        z = o_ref[pl.ds(rs, chunk), :] * scale + shift
        o_ref[pl.ds(rs, chunk), :] = jnp.where(z > 0, z, LEAKY_SLOPE * z)


def conv_block_forward(x_nchw, weight, bias, gamma, beta, *, padding=1):
    """x_nchw: (N, Cin, H, W); weight: (Cout, Cin, KH, KW) -> (N, Cout, Ho, Wo)."""
    del bias  # cancels exactly under train-mode BatchNorm (batch statistics)

    N, Cin, H, W = x_nchw.shape
    Cout, _, KH, KW = weight.shape
    Ho = H + 2 * padding - KH + 1
    Wo = W + 2 * padding - KW + 1

    K = KH * KW * Cin
    M = N * Ho * Wo

    # How many output pixels we pack per 128-lane row.
    if Cout <= 128 and 128 % Cout == 0:
        G = 128 // Cout
    else:
        G = 1                      # fallback: one pixel per row (padded lanes)
    cp_real = G * Cout
    Cp = _round_up(max(cp_real, 128), 128)
    Kg = G * K
    Kp = _round_up(max(Kg, 128), 128)

    # Row / chunk geometry (rows is the sublane extent of the kernel output).
    rows = -(-M // G)
    rows = _round_up(rows, 8)
    if rows > 128:
        rows = _round_up(rows, 128)
        chunk = 128
    else:
        chunk = rows
    n_chunks = rows // chunk
    Mp = rows * G

    # ---- layout plumbing (wrapper glue, pure data movement) ----------------
    x_nhwc = jnp.transpose(x_nchw, (0, 2, 3, 1)).astype(jnp.float32)
    xp = jnp.pad(x_nhwc, ((0, 0), (padding, padding), (padding, padding), (0, 0)))

    # im2col: (N, Ho, Wo, KH*KW*Cin), tap-major along the last axis.
    taps = [xp[:, kh:kh + Ho, kw:kw + Wo, :]
            for kh in range(KH) for kw in range(KW)]
    patches = jnp.concatenate(taps, axis=-1).reshape(M, K)

    # Pack G pixels per row: (Mp, K) -> (rows, G*K), then pad lanes to Kp.
    lhs = jnp.pad(patches, ((0, Mp - M), (0, 0))).reshape(rows, Kg)
    lhs = jnp.pad(lhs, ((0, 0), (0, Kp - Kg)))

    # Block-diagonal weight: kron(I_G, W_tap) with tap-major rows matching the
    # im2col column order; zero-pad the unused contraction rows / lanes.
    w_tap = jnp.transpose(weight, (2, 3, 1, 0)).reshape(K, Cout).astype(jnp.float32)
    w_bd = jnp.kron(jnp.eye(G, dtype=jnp.float32), w_tap)        # (Kg, cp_real)
    w_bd = jnp.pad(w_bd, ((0, Kp - Kg), (0, Cp - cp_real)))

    # gamma/beta tiled across the G lane groups (one tiny (2, Cp) DMA).
    affine = jnp.stack([
        jnp.pad(jnp.tile(gamma.astype(jnp.float32), G), (0, Cp - cp_real)),
        jnp.pad(jnp.tile(beta.astype(jnp.float32), G), (0, Cp - cp_real)),
    ])

    # Constant lane-group reduce+broadcast matrix (baked at trace time).
    idx = np.arange(Cp)
    grp = jnp.asarray(
        (idx[:, None] % Cout == idx[None, :] % Cout).astype(np.float32))

    kernel = functools.partial(_conv_bn_lrelu_kernel,
                               count=M, chunk=chunk, n_chunks=n_chunks)

    out2d = pl.pallas_call(
        kernel,
        out_shape=jax.ShapeDtypeStruct((rows, Cp), jnp.float32),
        in_specs=[
            pl.BlockSpec(memory_space=pltpu.MemorySpace.VMEM),
            pl.BlockSpec(memory_space=pltpu.MemorySpace.VMEM),
            pl.BlockSpec(memory_space=pltpu.MemorySpace.VMEM),
            pl.BlockSpec(memory_space=pltpu.MemorySpace.VMEM),
        ],
        out_specs=pl.BlockSpec(memory_space=pltpu.MemorySpace.VMEM),
    )(lhs, w_bd, grp, affine)

    # Unpack: (rows, G*Cout) -> (Mp, Cout) -> (N, Ho, Wo, Cout) -> NCHW.
    out = out2d[:, :cp_real].reshape(Mp, Cout)[:M].reshape(N, Ho, Wo, Cout)
    return jnp.transpose(out, (0, 3, 1, 2))


def _reference_forward(x_nchw, weight, bias, gamma, beta, *, padding=1):
    """Pure-JAX reference mirroring the PyTorch forward (training-mode BN)."""
    y = lax.conv_general_dilated(
        x_nchw.astype(jnp.float32),
        weight.astype(jnp.float32),
        window_strides=(1, 1),
        padding=[(padding, padding), (padding, padding)],
        dimension_numbers=("NCHW", "OIHW", "NCHW"),
    )
    y = y + bias[None, :, None, None]
    mean = jnp.mean(y, axis=(0, 2, 3), keepdims=True)
    var = jnp.mean((y - mean) ** 2, axis=(0, 2, 3), keepdims=True)
    yn = (y - mean) * lax.rsqrt(var + BN_EPS)
    yb = yn * gamma[None, :, None, None] + beta[None, :, None, None]
    return jnp.where(yb > 0, yb, LEAKY_SLOPE * yb)


if __name__ == "__main__":
    key = jax.random.PRNGKey(0)
    k_x, k_w, k_b, k_g, k_beta = jax.random.split(key, 5)

    N, Cin, H, W = 2, 4, 16, 16
    Cout, KH, KW = 8, 3, 3

    x = jax.random.normal(k_x, (N, Cin, H, W), dtype=jnp.float32)

    # Deterministic synthetic parameters (PyTorch-like scales).
    fan_in = Cin * KH * KW
    bound = 1.0 / np.sqrt(fan_in)
    weight = jax.random.uniform(k_w, (Cout, Cin, KH, KW),
                                minval=-bound, maxval=bound, dtype=jnp.float32)
    bias = jax.random.uniform(k_b, (Cout,), minval=-bound, maxval=bound,
                              dtype=jnp.float32)
    gamma = 1.0 + 0.1 * jax.random.normal(k_g, (Cout,), dtype=jnp.float32)
    beta = 0.1 * jax.random.normal(k_beta, (Cout,), dtype=jnp.float32)

    out = jax.block_until_ready(
        conv_block_forward(x, weight, bias, gamma, beta, padding=1)
    )
    ref = jax.block_until_ready(
        _reference_forward(x, weight, bias, gamma, beta, padding=1)
    )

    assert out.shape == (N, Cout, H, W), out.shape
    np.testing.assert_allclose(np.asarray(out), np.asarray(ref),
                               rtol=1e-4, atol=1e-4)
    print("KERNEL_OK")
</pallas_src>

<mosaic_0001>
module attributes {stable_mosaic.version = 11 : i64} {
  func.func @_conv_bn_lrelu_kernel(%arg0: memref<32x640xf32, #tpu.memory_space<vmem>>, %arg1: memref<640x128xf32, #tpu.memory_space<vmem>>, %arg2: memref<128x128xf32, #tpu.memory_space<vmem>>, %arg3: memref<2x128xf32, #tpu.memory_space<vmem>>, %arg4: memref<32x128xf32, #tpu.memory_space<vmem>>) attributes {dimension_semantics = [], scalar_prefetch = 0 : i64, scratch_operands = 0 : i64, tpu.core_type = #tpu.core_type<tc>} {
    %cst = arith.constant 0.000000e+00 : f32
    %0 = vector.broadcast %cst : f32 to vector<1x128xf32>
    %cst_0 = arith.constant 0.000000e+00 : f32
    %1 = vector.broadcast %cst_0 : f32 to vector<1x128xf32>
    %c0_i32 = arith.constant 0 : i32
    %2 = tpu.assume_multiple %c0_i32, 32 : i32
    %3 = arith.index_cast %2 : i32 to index
    %c0 = arith.constant 0 : index
    %4 = vector.load %arg0[%3, %c0] : memref<32x640xf32, #tpu.memory_space<vmem>>, vector<32x640xf32>
    %c0_1 = arith.constant 0 : index
    %c0_2 = arith.constant 0 : index
    %5 = vector.load %arg1[%c0_1, %c0_2] : memref<640x128xf32, #tpu.memory_space<vmem>>, vector<640x128xf32>
    %cst_3 = arith.constant dense<0.000000e+00> : vector<32x128xf32>
    %6 = tpu.matmul %4, %5, %cst_3 {dimension_numbers = #tpu.dot_dimension_numbers<[1], [0], [0], [1], [0, 0, 1, 1], [], []>} : vector<32x640xf32>, vector<640x128xf32>, vector<32x128xf32> -> vector<32x128xf32>
    %cst_4 = arith.constant dense<0.000000e+00> : vector<128xf32>
    %7 = vector.multi_reduction <add>, %6, %cst_4 [0] : vector<32x128xf32> to vector<128xf32>
    %8 = vector.shape_cast %7 : vector<128xf32> to vector<1x128xf32>
    %9 = arith.addf %0, %8 : vector<1x128xf32>
    %10 = arith.mulf %6, %6 : vector<32x128xf32>
    %cst_5 = arith.constant dense<0.000000e+00> : vector<128xf32>
    %11 = vector.multi_reduction <add>, %10, %cst_5 [0] : vector<32x128xf32> to vector<128xf32>
    %12 = vector.shape_cast %11 : vector<128xf32> to vector<1x128xf32>
    %13 = arith.addf %1, %12 : vector<1x128xf32>
    %14 = arith.index_cast %2 : i32 to index
    %c0_6 = arith.constant 0 : index
    %15 = vector.load %arg4[%14, %c0_6] : memref<32x128xf32, #tpu.memory_space<vmem>>, vector<32x128xf32>
    tpu.vector_store %arg4[%14, %c0_6], %6 {strides = array<i32>} : memref<32x128xf32, #tpu.memory_space<vmem>>, vector<32x128xf32>,
    %c0_7 = arith.constant 0 : index
    %c0_8 = arith.constant 0 : index
    %16 = vector.load %arg2[%c0_7, %c0_8] : memref<128x128xf32, #tpu.memory_space<vmem>>, vector<128x128xf32>
    %cst_9 = arith.constant dense<0.000000e+00> : vector<1x128xf32>
    %17 = tpu.matmul %9, %16, %cst_9 {dimension_numbers = #tpu.dot_dimension_numbers<[1], [0], [0], [1], [0, 0, 1, 1], [], []>} : vector<1x128xf32>, vector<128x128xf32>, vector<1x128xf32> -> vector<1x128xf32>
    %c0_10 = arith.constant 0 : index
    %c0_11 = arith.constant 0 : index
    %18 = vector.load %arg2[%c0_10, %c0_11] : memref<128x128xf32, #tpu.memory_space<vmem>>, vector<128x128xf32>
    %cst_12 = arith.constant dense<0.000000e+00> : vector<1x128xf32>
    %19 = tpu.matmul %13, %18, %cst_12 {dimension_numbers = #tpu.dot_dimension_numbers<[1], [0], [0], [1], [0, 0, 1, 1], [], []>} : vector<1x128xf32>, vector<128x128xf32>, vector<1x128xf32> -> vector<1x128xf32>
    %cst_13 = arith.constant 0.001953125 : f32
    %20 = vector.broadcast %cst_13 : f32 to vector<1x128xf32>
    %21 = arith.mulf %17, %20 : vector<1x128xf32>
    %cst_14 = arith.constant 0.001953125 : f32
    %22 = vector.broadcast %cst_14 : f32 to vector<1x128xf32>
    %23 = arith.mulf %19, %22 : vector<1x128xf32>
    %24 = arith.mulf %21, %21 : vector<1x128xf32>
    %25 = arith.subf %23, %24 : vector<1x128xf32>
    %cst_15 = arith.constant 0.000000e+00 : f32
    %26 = vector.broadcast %cst_15 : f32 to vector<1x128xf32>
    %27 = arith.maximumf %25, %26 : vector<1x128xf32>
    %c0_16 = arith.constant 0 : index
    %c0_17 = arith.constant 0 : index
    %28 = vector.load %arg3[%c0_16, %c0_17] : memref<2x128xf32, #tpu.memory_space<vmem>>, vector<1x128xf32>
    %c1 = arith.constant 1 : index
    %c0_18 = arith.constant 0 : index
    %29 = vector.load %arg3[%c1, %c0_18] : memref<2x128xf32, #tpu.memory_space<vmem>>, vector<1x128xf32>
    %cst_19 = arith.constant 9.99999974E-6 : f32
    %30 = vector.broadcast %cst_19 : f32 to vector<1x128xf32>
    %31 = arith.addf %27, %30 : vector<1x128xf32>
    %32 = math.rsqrt %31 : vector<1x128xf32>
    %33 = arith.mulf %28, %32 : vector<1x128xf32>
    %34 = arith.mulf %21, %33 : vector<1x128xf32>
    %35 = arith.subf %29, %34 : vector<1x128xf32>
    %c0_i32_20 = arith.constant 0 : i32
    %36 = tpu.assume_multiple %c0_i32_20, 32 : i32
    %37 = arith.index_cast %36 : i32 to index
    %c0_21 = arith.constant 0 : index
    %38 = vector.load %arg4[%37, %c0_21] : memref<32x128xf32, #tpu.memory_space<vmem>>, vector<32x128xf32>
    %39 = vector.broadcast %33 : vector<1x128xf32> to vector<32x128xf32>
    %40 = arith.mulf %38, %39 : vector<32x128xf32>
    %41 = vector.broadcast %35 : vector<1x128xf32> to vector<32x128xf32>
    %42 = arith.addf %40, %41 : vector<32x128xf32>
    %cst_22 = arith.constant 0.000000e+00 : f32
    %43 = vector.broadcast %cst_22 : f32 to vector<32x128xf32>
    %44 = arith.cmpf ogt, %42, %43 : vector<32x128xf32>
    %cst_23 = arith.constant 0.00999999977 : f32
    %45 = vector.broadcast %cst_23 : f32 to vector<32x128xf32>
    %46 = arith.mulf %45, %42 : vector<32x128xf32>
    %47 = arith.select %44, %42, %46 : vector<32x128xi1>, vector<32x128xf32>
    %48 = arith.index_cast %36 : i32 to index
    %c0_24 = arith.constant 0 : index
    %49 = vector.load %arg4[%48, %c0_24] : memref<32x128xf32, #tpu.memory_space<vmem>>, vector<32x128xf32>
    tpu.vector_store %arg4[%48, %c0_24], %47 {strides = array<i32>} : memref<32x128xf32, #tpu.memory_space<vmem>>, vector<32x128xf32>,
    return
  }
}

</mosaic_0001>

<llo_original>
// kernel: tpu_custom_call.1
$region0: #{tpu_custom_call.1}
  #allocation0 [shape = 'u32[]', space=smem, size = 0x4, offset = 0x4, fixed_abs, tag = 'smem constant byte address 0x4 - core index']
  #allocation1 [shape = 'u32[144,128]{1,0:T(1,128)}', space=vmem, size = 0x12000, scoped, tag = 'internal scratch']
  %s0 = inlined_call_operand.hbm [shape: f32[32,640], index: 0, kind: input, shape index: {}]
  %s1 = inlined_call_operand.hbm [shape: f32[640,128], index: 1, kind: input, shape index: {}]
  %s2 = inlined_call_operand.hbm [shape: f32[128,128], index: 2, kind: input, shape index: {}]
  %s3 = inlined_call_operand.vmem [shape: f32[2,128], index: 3, kind: input, shape index: {}]
  %s4 = inlined_call_operand.hbm [shape: f32[32,128], index: 4, kind: output, shape index: {}]
  %s5 = sld [smem:[#allocation0]]
  $region38: #{tpu_custom_call.1} parent=0
    _
  %s7 = ssub.s32 1, %s5
  %s8 = scalar_select 0, %s7, %s5
  $region1: #{tpu_custom_call.1} parent=0
    #allocation2 [shape = 'u8[81920]{0}', space=vmem, size = 0x14000, scoped, tag = 'input window, operand 0, single buffered']
    #allocation3 [shape = 's32[1]{0}', space=sflag, size = 0x4, scoped, tag = 'scoped memory for tpu_custom_call.1']
    #allocation4 [shape = 's32[1]{0}', space=sflag, size = 0x4, scoped, tag = 'scoped memory for tpu_custom_call.1']
    #allocation5 [shape = 'u8[327680]{0}', space=vmem, size = 0x50000, scoped, tag = 'input window, operand 1, single buffered']
    #allocation6 [shape = 's32[1]{0}', space=sflag, size = 0x4, scoped, tag = 'scoped memory for tpu_custom_call.1']
    #allocation7 [shape = 'u8[65536]{0}', space=vmem, size = 0x10000, scoped, tag = 'input window, operand 2, single buffered']
    #allocation8 [shape = 'u8[16384]{0}', space=vmem, size = 0x4000, scoped, tag = 'output window, operand 0, single buffered']
    %9 = vsyncpa [#allocation3], 0
    %10 = vsyncpa [#allocation6], 0
    %11 = vsyncpa [#allocation4], 0
    // Predicated region
    $region2: #{tpu_custom_call.1} parent=1 // pred_check
      _
    $region3: #{tpu_custom_call.1} parent=1 // pred_check_branch
      %13 = sbr.rel (0) target = $region5
    $region4: #{tpu_custom_call.1} parent=1 // pred_region
      %s15 = ssub.s32 2560, 2560
      %16 = vsyncadd [#allocation3], %s15
      %s17 = sshll.u32 [#allocation2], 4
      %s18 = int_to_ptr.vmem [resolvable:$true] %s17
      %23 = dma.hbm_to_vmem [thread:$0]  %s0, 2560, %s18, [#allocation3], 640, 640, 40
    $region5: #{tpu_custom_call.1} parent=1 // pred_fallthru
      _
    // Predicated region
    $region6: #{tpu_custom_call.1} parent=1 // pred_check
      _
    $region7: #{tpu_custom_call.1} parent=1 // pred_check_branch
      %25 = sbr.rel (0) target = $region9
    $region8: #{tpu_custom_call.1} parent=1 // pred_region
      %s27 = ssub.s32 10240, 10240
      %28 = vsyncadd [#allocation6], %s27
      %s29 = sshll.u32 [#allocation5], 4
      %s30 = int_to_ptr.vmem [resolvable:$true] %s29
      %35 = dma.hbm_to_vmem [thread:$0]  %s1, 10240, %s30, [#allocation6], 128, 128, 8
    $region9: #{tpu_custom_call.1} parent=1 // pred_fallthru
      _
    // Predicated region
    $region10: #{tpu_custom_call.1} parent=1 // pred_check
      _
    $region11: #{tpu_custom_call.1} parent=1 // pred_check_branch
      %37 = sbr.rel (0) target = $region13
    $region12: #{tpu_custom_call.1} parent=1 // pred_region
      %s39 = ssub.s32 2048, 2048
      %40 = vsyncadd [#allocation6], %s39
      %s41 = sshll.u32 [#allocation7], 4
      %s42 = int_to_ptr.vmem [resolvable:$true] %s41
      %47 = dma.hbm_to_vmem [thread:$0]  %s2, 2048, %s42, [#allocation6], 128, 128, 8
    $region13: #{tpu_custom_call.1} parent=1 // pred_fallthru
      _
    // Predicated region
    $region14: #{tpu_custom_call.1} parent=1 // pred_check
      _
    $region15: #{tpu_custom_call.1} parent=1 // pred_check_branch
      %49 = sbr.rel (0) target = $region17
    $region16: #{tpu_custom_call.1} parent=1 // pred_region
      _
    $region17: #{tpu_custom_call.1} parent=1 // pred_fallthru
      _
    // Predicated region
    $region18: #{tpu_custom_call.1} parent=1 // pred_check
      _
    $region19: #{tpu_custom_call.1} parent=1 // pred_check_branch
      %51 = sbr.rel (0) target = $region21
    $region20: #{tpu_custom_call.1} parent=1 // pred_region
      %52 = dma.done [#allocation3], 2560
    $region21: #{tpu_custom_call.1} parent=1 // pred_fallthru
      _
    // Predicated region
    $region22: #{tpu_custom_call.1} parent=1 // pred_check
      _
    $region23: #{tpu_custom_call.1} parent=1 // pred_check_branch
      %54 = sbr.rel (0) target = $region25
    $region24: #{tpu_custom_call.1} parent=1 // pred_region
      %55 = dma.done [#allocation6], 10240
    $region25: #{tpu_custom_call.1} parent=1 // pred_fallthru
      _
    // Predicated region
    $region26: #{tpu_custom_call.1} parent=1 // pred_check
      _
    $region27: #{tpu_custom_call.1} parent=1 // pred_check_branch
      %57 = sbr.rel (0) target = $region29
    $region28: #{tpu_custom_call.1} parent=1 // pred_region
      %58 = dma.done [#allocation6], 2048
    $region29: #{tpu_custom_call.1} parent=1 // pred_fallthru
      _
    %s59 = smul.u32 0, 5
    %s60 = smul.addr %s59, 8
    %s61 = scalar_lea.vmem [#allocation2], %s60
    %v62 = vld [vmem:[%s61] sm:$0xff]
    %v63 = vld [vmem:[%s61 + $0x8] sm:$0xff]
    %v64 = vld [vmem:[%s61 + $0x10] sm:$0xff]
    %v65 = vld [vmem:[%s61 + $0x18] sm:$0xff]
    %v66 = vld [vmem:[%s61 + $0x20] sm:$0xff]
    %v67 = vld [vmem:[%s61 + $0x28] sm:$0xff]
    %v68 = vld [vmem:[%s61 + $0x30] sm:$0xff]
    %v69 = vld [vmem:[%s61 + $0x38] sm:$0xff]
    %v70 = vld [vmem:[%s61 + $0x40] sm:$0xff]
    %v71 = vld [vmem:[%s61 + $0x48] sm:$0xff]
    %v72 = vld [vmem:[%s61 + $0x50] sm:$0xff]
    %v73 = vld [vmem:[%s61 + $0x58] sm:$0xff]
    %v74 = vld [vmem:[%s61 + $0x60] sm:$0xff]
    %v75 = vld [vmem:[%s61 + $0x68] sm:$0xff]
    %v76 = vld [vmem:[%s61 + $0x70] sm:$0xff]
    %v77 = vld [vmem:[%s61 + $0x78] sm:$0xff]
    %v78 = vld [vmem:[%s61 + $0x80] sm:$0xff]
    %v79 = vld [vmem:[%s61 + $0x88] sm:$0xff]
    %v80 = vld [vmem:[%s61 + $0x90] sm:$0xff]
    %v81 = vld [vmem:[%s61 + $0x98] sm:$0xff]
    %v82 = vld [vmem:[#allocation5] sm:$0xff]
    %v83 = vld [vmem:[#allocation5 + $0x8] sm:$0xff]
    %v84 = vld [vmem:[#allocation5 + $0x10] sm:$0xff]
    %v85 = vld [vmem:[#allocation5 + $0x18] sm:$0xff]
    %v86 = vld [vmem:[#allocation5 + $0x20] sm:$0xff]
    %v87 = vld [vmem:[#allocation5 + $0x28] sm:$0xff]
    %v88 = vld [vmem:[#allocation5 + $0x30] sm:$0xff]
    %v89 = vld [vmem:[#allocation5 + $0x38] sm:$0xff]
    %v90 = vld [vmem:[#allocation5 + $0x40] sm:$0xff]
    %v91 = vld [vmem:[#allocation5 + $0x48] sm:$0xff]
    %v92 = vld [vmem:[#allocation5 + $0x50] sm:$0xff]
    %v93 = vld [vmem:[#allocation5 + $0x58] sm:$0xff]
    %v94 = vld [vmem:[#allocation5 + $0x60] sm:$0xff]
    %v95 = vld [vmem:[#allocation5 + $0x68] sm:$0xff]
    %v96 = vld [vmem:[#allocation5 + $0x70] sm:$0xff]
    %v97 = vld [vmem:[#allocation5 + $0x78] sm:$0xff]
    %v98 = vld [vmem:[#allocation5 + $0x80] sm:$0xff]
    %v99 = vld [vmem:[#allocation5 + $0x88] sm:$0xff]
    %v100 = vld [vmem:[#allocation5 + $0x90] sm:$0xff]
    %v101 = vld [vmem:[#allocation5 + $0x98] sm:$0xff]
    %v102 = vld [vmem:[#allocation5 + $0xa0] sm:$0xff]
    %v103 = vld [vmem:[#allocation5 + $0xa8] sm:$0xff]
    %v104 = vld [vmem:[#allocation5 + $0xb0] sm:$0xff]
    %v105 = vld [vmem:[#allocation5 + $0xb8] sm:$0xff]
    %v106 = vld [vmem:[#allocation5 + $0xc0] sm:$0xff]
    %v107 = vld [vmem:[#allocation5 + $0xc8] sm:$0xff]
    %v108 = vld [vmem:[#allocation5 + $0xd0] sm:$0xff]
    %v109 = vld [vmem:[#allocation5 + $0xd8] sm:$0xff]
    %v110 = vld [vmem:[#allocation5 + $0xe0] sm:$0xff]
    %v111 = vld [vmem:[#allocation5 + $0xe8] sm:$0xff]
    %v112 = vld [vmem:[#allocation5 + $0xf0] sm:$0xff]
    %v113 = vld [vmem:[#allocation5 + $0xf8] sm:$0xff]
    %v114 = vld [vmem:[#allocation5 + $0x100] sm:$0xff]
    %v115 = vld [vmem:[#allocation5 + $0x108] sm:$0xff]
    %v116 = vld [vmem:[#allocation5 + $0x110] sm:$0xff]
    %v117 = vld [vmem:[#allocation5 + $0x118] sm:$0xff]
    %v118 = vld [vmem:[#allocation5 + $0x120] sm:$0xff]
    %v119 = vld [vmem:[#allocation5 + $0x128] sm:$0xff]
    %v120 = vld [vmem:[#allocation5 + $0x130] sm:$0xff]
    %v121 = vld [vmem:[#allocation5 + $0x138] sm:$0xff]
    %v122 = vld [vmem:[#allocation5 + $0x140] sm:$0xff]
    %v123 = vld [vmem:[#allocation5 + $0x148] sm:$0xff]
    %v124 = vld [vmem:[#allocation5 + $0x150] sm:$0xff]
    %v125 = vld [vmem:[#allocation5 + $0x158] sm:$0xff]
    %v126 = vld [vmem:[#allocation5 + $0x160] sm:$0xff]
    %v127 = vld [vmem:[#allocation5 + $0x168] sm:$0xff]
    %v128 = vld [vmem:[#allocation5 + $0x170] sm:$0xff]
    %v129 = vld [vmem:[#allocation5 + $0x178] sm:$0xff]
    %v130 = vld [vmem:[#allocation5 + $0x180] sm:$0xff]
    %v131 = vld [vmem:[#allocation5 + $0x188] sm:$0xff]
    %v132 = vld [vmem:[#allocation5 + $0x190] sm:$0xff]
    %v133 = vld [vmem:[#allocation5 + $0x198] sm:$0xff]
    %v134 = vld [vmem:[#allocation5 + $0x1a0] sm:$0xff]
    %v135 = vld [vmem:[#allocation5 + $0x1a8] sm:$0xff]
    %v136 = vld [vmem:[#allocation5 + $0x1b0] sm:$0xff]
    %v137 = vld [vmem:[#allocation5 + $0x1b8] sm:$0xff]
    %v138 = vld [vmem:[#allocation5 + $0x1c0] sm:$0xff]
    %v139 = vld [vmem:[#allocation5 + $0x1c8] sm:$0xff]
    %v140 = vld [vmem:[#allocation5 + $0x1d0] sm:$0xff]
    %v141 = vld [vmem:[#allocation5 + $0x1d8] sm:$0xff]
    %v142 = vld [vmem:[#allocation5 + $0x1e0] sm:$0xff]
    %v143 = vld [vmem:[#allocation5 + $0x1e8] sm:$0xff]
    %v144 = vld [vmem:[#allocation5 + $0x1f0] sm:$0xff]
    %v145 = vld [vmem:[#allocation5 + $0x1f8] sm:$0xff]
    %v146 = vld [vmem:[#allocation5 + $0x200] sm:$0xff]
    %v147 = vld [vmem:[#allocation5 + $0x208] sm:$0xff]
    %v148 = vld [vmem:[#allocation5 + $0x210] sm:$0xff]
    %v149 = vld [vmem:[#allocation5 + $0x218] sm:$0xff]
    %v150 = vld [vmem:[#allocation5 + $0x220] sm:$0xff]
    %v151 = vld [vmem:[#allocation5 + $0x228] sm:$0xff]
    %v152 = vld [vmem:[#allocation5 + $0x230] sm:$0xff]
    %v153 = vld [vmem:[#allocation5 + $0x238] sm:$0xff]
    %v154 = vld [vmem:[#allocation5 + $0x240] sm:$0xff]
    %v155 = vld [vmem:[#allocation5 + $0x248] sm:$0xff]
    %v156 = vld [vmem:[#allocation5 + $0x250] sm:$0xff]
    %v157 = vld [vmem:[#allocation5 + $0x258] sm:$0xff]
    %v158 = vld [vmem:[#allocation5 + $0x260] sm:$0xff]
    %v159 = vld [vmem:[#allocation5 + $0x268] sm:$0xff]
    %v160 = vld [vmem:[#allocation5 + $0x270] sm:$0xff]
    %v161 = vld [vmem:[#allocation5 + $0x278] sm:$0xff]
    %162 = vmatprep.subr.mxu0 0.0
    %163 = vmatpush1.msra.mxu0 %v82
    %164 = vmatprep.subr.mxu0 0.0
    %165 = vmatpush1.msra.mxu0 %v83
    %166 = vmatprep.subr.mxu0 0.0
    %167 = vmatpush1.msra.mxu0 %v84
    %168 = vmatprep.subr.mxu0 0.0
    %169 = vmatpush1.msra.mxu0 %v85
    %170 = vmatprep.subr.mxu0 0.0
    %171 = vmatpush1.msra.mxu0 %v86
    %172 = vmatprep.subr.mxu0 0.0
    %173 = vmatpush1.msra.mxu0 %v87
    %174 = vmatprep.subr.mxu0 0.0
    %175 = vmatpush1.msra.mxu0 %v88
    %176 = vmatprep.subr.mxu0 0.0
    %177 = vmatpush1.msra.mxu0 %v89
    %178 = vmatprep.subr.mxu0 0.0
    %179 = vmatpush1.msra.mxu0 %v90
    %180 = vmatprep.subr.mxu0 0.0
    %181 = vmatpush1.msra.mxu0 %v91
    %182 = vmatprep.subr.mxu0 0.0
    %183 = vmatpush1.msra.mxu0 %v92
    %184 = vmatprep.subr.mxu0 0.0
    %185 = vmatpush1.msra.mxu0 %v93
    %186 = vmatprep.subr.mxu0 0.0
    %187 = vmatpush1.msra.mxu0 %v94
    %188 = vmatprep.subr.mxu0 0.0
    %189 = vmatpush1.msra.mxu0 %v95
    %190 = vmatprep.subr.mxu0 0.0
    %191 = vmatpush1.msra.mxu0 %v96
    %192 = vmatprep.subr.mxu0 0.0
    %193 = vmatpush1.msra.mxu0 %v97
    %194 = vmatprep.subr.mxu0 0.0
    %195 = vmatpush1.msra.mxu0 %v98
    %196 = vmatprep.subr.mxu0 0.0
    %197 = vmatpush1.msra.mxu0 %v99
    %198 = vmatprep.subr.mxu0 0.0
    %199 = vmatpush1.msra.mxu0 %v100
    %200 = vmatprep.subr.mxu0 0.0
    %201 = vmatpush1.msra.mxu0 %v101
    %202 = vmatprep.subr.mxu0 0.0
    %203 = vmatpush1.msra.mxu0 %v102
    %204 = vmatprep.subr.mxu0 0.0
    %205 = vmatpush1.msra.mxu0 %v103
    %206 = vmatprep.subr.mxu0 0.0
    %207 = vmatpush1.msra.mxu0 %v104
    %208 = vmatprep.subr.mxu0 0.0
    %209 = vmatpush1.msra.mxu0 %v105
    %210 = vmatprep.subr.mxu0 0.0
    %211 = vmatpush1.msra.mxu0 %v106
    %212 = vmatprep.subr.mxu0 0.0
    %213 = vmatpush1.msra.mxu0 %v107
    %214 = vmatprep.subr.mxu0 0.0
    %215 = vmatpush1.msra.mxu0 %v108
    %216 = vmatprep.subr.mxu0 0.0
    %217 = vmatpush1.msra.mxu0 %v109
    %218 = vmatprep.subr.mxu0 0.0
    %219 = vmatpush1.msra.mxu0 %v110
    %220 = vmatprep.subr.mxu0 0.0
    %221 = vmatpush1.msra.mxu0 %v111
    %222 = vmatprep.subr.mxu0 0.0
    %223 = vmatpush1.msra.mxu0 %v112
    %224 = vmatprep.subr.mxu0 0.0
    %225 = vmatpush1.msra.mxu0 %v113
    %226 = vmatprep.mubr.f32.mxu0 %v63
    %227 = vmatmul.mubr.f32.gmra.mrb[0].mxu0 %v62
    %v228 = vpop.f32.mrb[0].mxu0
    %v229 = vadd.f32 0.0, %v228
    %v230 = vpop.f32.mrb[0].mxu0
    %231 = vmatprep.mubr.f32.mxu0 %v68
    %232 = vmatmul.mubr.f32.gmra.mrb[0].mxu0 %v67
    %v233 = vpop.f32.mrb[0].mxu0
    %v234 = vadd.f32 0.0, %v233
    %v235 = vpop.f32.mrb[0].mxu0
    %236 = vmatprep.mubr.f32.mxu0 %v73
    %237 = vmatmul.mubr.f32.gmra.mrb[0].mxu0 %v72
    %v238 = vpop.f32.mrb[0].mxu0
    %v239 = vadd.f32 0.0, %v238
    %v240 = vpop.f32.mrb[0].mxu0
    %241 = vmatprep.mubr.f32.mxu0 %v78
    %242 = vmatmul.mubr.f32.gmra.mrb[0].mxu0 %v77
    %v243 = vpop.f32.mrb[0].mxu0
    %v244 = vadd.f32 0.0, %v243
    %v245 = vpop.f32.mrb[0].mxu0
    %246 = vdwg.mxu0
    %247 = vmatprep.subr.mxu0 0.0
    %248 = vmatpush1.msra.mxu0 %v114
    %249 = vmatprep.subr.mxu0 0.0
    %250 = vmatpush1.msra.mxu0 %v115
    %251 = vmatprep.subr.mxu0 0.0
    %252 = vmatpush1.msra.mxu0 %v116
    %253 = vmatprep.subr.mxu0 0.0
    %254 = vmatpush1.msra.mxu0 %v117
    %255 = vmatprep.subr.mxu0 0.0
    %256 = vmatpush1.msra.mxu0 %v118
    %257 = vmatprep.subr.mxu0 0.0
    %258 = vmatpush1.msra.mxu0 %v119
    %259 = vmatprep.subr.mxu0 0.0
    %260 = vmatpush1.msra.mxu0 %v120
    %261 = vmatprep.subr.mxu0 0.0
    %262 = vmatpush1.msra.mxu0 %v121
    %263 = vmatprep.subr.mxu0 0.0
    %264 = vmatpush1.msra.mxu0 %v122
    %265 = vmatprep.subr.mxu0 0.0
    %266 = vmatpush1.msra.mxu0 %v123
    %267 = vmatprep.subr.mxu0 0.0
    %268 = vmatpush1.msra.mxu0 %v124
    %269 = vmatprep.subr.mxu0 0.0
    %270 = vmatpush1.msra.mxu0 %v125
    %271 = vmatprep.subr.mxu0 0.0
    %272 = vmatpush1.msra.mxu0 %v126
    %273 = vmatprep.subr.mxu0 0.0
    %274 = vmatpush1.msra.mxu0 %v127
    %275 = vmatprep.subr.mxu0 0.0
    %276 = vmatpush1.msra.mxu0 %v128
    %277 = vmatprep.subr.mxu0 0.0
    %278 = vmatpush1.msra.mxu0 %v129
    %279 = vmatprep.subr.mxu0 0.0
    %280 = vmatpush1.msra.mxu0 %v130
    %281 = vmatprep.subr.mxu0 0.0
    %282 = vmatpush1.msra.mxu0 %v131
    %283 = vmatprep.subr.mxu0 0.0
    %284 = vmatpush1.msra.mxu0 %v132
    %285 = vmatprep.subr.mxu0 0.0
    %286 = vmatpush1.msra.mxu0 %v133
    %287 = vmatprep.subr.mxu0 0.0
    %288 = vmatpush1.msra.mxu0 %v134
    %289 = vmatprep.subr.mxu0 0.0
    %290 = vmatpush1.msra.mxu0 %v135
    %291 = vmatprep.subr.mxu0 0.0
    %292 = vmatpush1.msra.mxu0 %v136
    %293 = vmatprep.subr.mxu0 0.0
    %294 = vmatpush1.msra.mxu0 %v137
    %295 = vmatprep.subr.mxu0 0.0
    %296 = vmatpush1.msra.mxu0 %v138
    %297 = vmatprep.subr.mxu0 0.0
    %298 = vmatpush1.msra.mxu0 %v139
    %299 = vmatprep.subr.mxu0 0.0
    %300 = vmatpush1.msra.mxu0 %v140
    %301 = vmatprep.subr.mxu0 0.0
    %302 = vmatpush1.msra.mxu0 %v141
    %303 = vmatprep.subr.mxu0 0.0
    %304 = vmatpush1.msra.mxu0 %v142
    %305 = vmatprep.subr.mxu0 0.0
    %306 = vmatpush1.msra.mxu0 %v143
    %307 = vmatprep.subr.mxu0 0.0
    %308 = vmatpush1.msra.mxu0 %v144
    %309 = vmatprep.subr.mxu0 0.0
    %310 = vmatpush1.msra.mxu0 %v145
    %311 = vmatprep.mubr.f32.mxu0 %v65
    %312 = vmatmul.mubr.f32.gmra.mrb[0].mxu0 %v64
    %v313 = vpop.f32.mrb[0].mxu0
    %v314 = vadd.f32 %v229, %v313
    %v315 = vpop.f32.mrb[0].mxu0
    %316 = vmatprep.mubr.f32.mxu0 %v70
    %317 = vmatmul.mubr.f32.gmra.mrb[0].mxu0 %v69
    %v318 = vpop.f32.mrb[0].mxu0
    %v319 = vadd.f32 %v234, %v318
    %v320 = vpop.f32.mrb[0].mxu0
    %321 = vmatprep.mubr.f32.mxu0 %v75
    %322 = vmatmul.mubr.f32.gmra.mrb[0].mxu0 %v74
    %v323 = vpop.f32.mrb[0].mxu0
    %v324 = vadd.f32 %v239, %v323
    %v325 = vpop.f32.mrb[0].mxu0
    %326 = vmatprep.mubr.f32.mxu0 %v80
    %327 = vmatmul.mubr.f32.gmra.mrb[0].mxu0 %v79
    %v328 = vpop.f32.mrb[0].mxu0
    %v329 = vadd.f32 %v244, %v328
    %v330 = vpop.f32.mrb[0].mxu0
    %331 = vdwg.mxu0
    %332 = vmatprep.subr.mxu0 0.0
    %333 = vmatpush1.msra.mxu0 %v146
    %334 = vmatprep.subr.mxu0 0.0
    %335 = vmatpush1.msra.mxu0 %v147
    %336 = vmatprep.subr.mxu0 0.0
    %337 = vmatpush1.msra.mxu0 %v148
    %338 = vmatprep.subr.mxu0 0.0
    %339 = vmatpush1.msra.mxu0 %v149
    %340 = vmatprep.subr.mxu0 0.0
    %341 = vmatpush1.msra.mxu0 %v150
    %342 = vmatprep.subr.mxu0 0.0
    %343 = vmatpush1.msra.mxu0 %v151
    %344 = vmatprep.subr.mxu0 0.0
    %345 = vmatpush1.msra.mxu0 %v152
    %346 = vmatprep.subr.mxu0 0.0
    %347 = vmatpush1.msra.mxu0 %v153
    %348 = vmatprep.subr.mxu0 0.0
    %349 = vmatpush1.msra.mxu0 %v154
    %350 = vmatprep.subr.mxu0 0.0
    %351 = vmatpush1.msra.mxu0 %v155
    %352 = vmatprep.subr.mxu0 0.0
    %353 = vmatpush1.msra.mxu0 %v156
    %354 = vmatprep.subr.mxu0 0.0
    %355 = vmatpush1.msra.mxu0 %v157
    %356 = vmatprep.subr.mxu0 0.0
    %357 = vmatpush1.msra.mxu0 %v158
    %358 = vmatprep.subr.mxu0 0.0
    %359 = vmatpush1.msra.mxu0 %v159
    %360 = vmatprep.subr.mxu0 0.0
    %361 = vmatpush1.msra.mxu0 %v160
    %362 = vmatprep.subr.mxu0 0.0
    %363 = vmatpush1.msra.mxu0 %v161
    %364 = vmatprep.subr.mxu0 0.0
    %365 = vmatpush1.msra.mxu0 0.0
    %366 = vmatprep.subr.mxu0 0.0
    %367 = vmatpush1.msra.mxu0 0.0
    %368 = vmatprep.subr.mxu0 0.0
    %369 = vmatpush1.msra.mxu0 0.0
    %370 = vmatprep.subr.mxu0 0.0
    %371 = vmatpush1.msra.mxu0 0.0
    %372 = vmatprep.subr.mxu0 0.0
    %373 = vmatpush1.msra.mxu0 0.0
    %374 = vmatprep.subr.mxu0 0.0
    %375 = vmatpush1.msra.mxu0 0.0
    %376 = vmatprep.subr.mxu0 0.0
    %377 = vmatpush1.msra.mxu0 0.0
    %378 = vmatprep.subr.mxu0 0.0
    %379 = vmatpush1.msra.mxu0 0.0
    %380 = vmatprep.subr.mxu0 0.0
    %381 = vmatpush1.msra.mxu0 0.0
    %382 = vmatprep.subr.mxu0 0.0
    %383 = vmatpush1.msra.mxu0 0.0
    %384 = vmatprep.subr.mxu0 0.0
    %385 = vmatpush1.msra.mxu0 0.0
    %386 = vmatprep.subr.mxu0 0.0
    %387 = vmatpush1.msra.mxu0 0.0
    %388 = vmatprep.subr.mxu0 0.0
    %389 = vmatpush1.msra.mxu0 0.0
    %390 = vmatprep.subr.mxu0 0.0
    %391 = vmatpush1.msra.mxu0 0.0
    %392 = vmatprep.subr.mxu0 0.0
    %393 = vmatpush1.msra.mxu0 0.0
    %394 = vmatprep.subr.mxu0 0.0
    %395 = vmatpush1.msra.mxu0 0.0
    %396 = vmatprep.mubr.f32.mxu0 0.0
    %397 = vmatmul.mubr.f32.gmra.mrb[0].mxu0 %v66
    %v398 = vpop.f32.mrb[0].mxu0
    %v399 = vadd.f32 %v314, %v398
    %v400 = vpop.f32.mrb[0].mxu0
    %401 = vmatprep.mubr.f32.mxu0 0.0
    %402 = vmatmul.mubr.f32.gmra.mrb[0].mxu0 %v71
    %v403 = vpop.f32.mrb[0].mxu0
    %v404 = vadd.f32 %v319, %v403
    %v405 = vpop.f32.mrb[0].mxu0
    %406 = vmatprep.mubr.f32.mxu0 0.0
    %407 = vmatmul.mubr.f32.gmra.mrb[0].mxu0 %v76
    %v408 = vpop.f32.mrb[0].mxu0
    %v409 = vadd.f32 %v324, %v408
    %v410 = vpop.f32.mrb[0].mxu0
    %411 = vmatprep.mubr.f32.mxu0 0.0
    %412 = vmatmul.mubr.f32.gmra.mrb[0].mxu0 %v81
    %v413 = vpop.f32.mrb[0].mxu0
    %v414 = vadd.f32 %v329, %v413
    %v415 = vpop.f32.mrb[0].mxu0
    %416 = vdwg.mxu0
    %v417 = vadd.f32 %v399, %v404
    %v418 = vadd.f32 %v417, %v409
    %v419 = vadd.f32 %v418, %v414
    %v420 = vrot.slane %v419, 4
    %v421 = vadd.f32 %v419, %v420
    %v422 = vrot.slane %v421, 2
    %v423 = vadd.f32 %v421, %v422
    %v424 = vrot.slane %v423, 1
    %v425 = vadd.f32 %v423, %v424
    %v426 = vadd.f32 %v425, 0.0
    %v427 = vmul.f32 %v399, %v399
    %v428 = vmul.f32 %v404, %v404
    %v429 = vmul.f32 %v409, %v409
    %v430 = vmul.f32 %v414, %v414
    %v431 = vadd.f32 %v427, %v428
    %v432 = vadd.f32 %v431, %v429
    %v433 = vadd.f32 %v432, %v430
    %v434 = vrot.slane %v433, 4
    %v435 = vadd.f32 %v433, %v434
    %v436 = vrot.slane %v435, 2
    %v437 = vadd.f32 %v435, %v436
    %v438 = vrot.slane %v437, 1
    %v439 = vadd.f32 %v437, %v438
    %v440 = vadd.f32 %v439, 0.0
    %441 = vst [vmem:[#allocation8] sm:$0xff] %v399
    %442 = vst [vmem:[#allocation8 + $0x8] sm:$0xff] %v404
    %443 = vst [vmem:[#allocation8 + $0x10] sm:$0xff] %v409
    %444 = vst [vmem:[#allocation8 + $0x18] sm:$0xff] %v414
    %v445 = vld [vmem:[#allocation7] sm:$0xff]
    %v446 = vld [vmem:[#allocation7 + $0x8] sm:$0xff]
    %v447 = vld [vmem:[#allocation7 + $0x10] sm:$0xff]
    %v448 = vld [vmem:[#allocation7 + $0x18] sm:$0xff]
    %v449 = vld [vmem:[#allocation7 + $0x20] sm:$0xff]
    %v450 = vld [vmem:[#allocation7 + $0x28] sm:$0xff]
    %v451 = vld [vmem:[#allocation7 + $0x30] sm:$0xff]
    %v452 = vld [vmem:[#allocation7 + $0x38] sm:$0xff]
    %v453 = vld [vmem:[#allocation7 + $0x40] sm:$0xff]
    %v454 = vld [vmem:[#allocation7 + $0x48] sm:$0xff]
    %v455 = vld [vmem:[#allocation7 + $0x50] sm:$0xff]
    %v456 = vld [vmem:[#allocation7 + $0x58] sm:$0xff]
    %v457 = vld [vmem:[#allocation7 + $0x60] sm:$0xff]
    %v458 = vld [vmem:[#allocation7 + $0x68] sm:$0xff]
    %v459 = vld [vmem:[#allocation7 + $0x70] sm:$0xff]
    %v460 = vld [vmem:[#allocation7 + $0x78] sm:$0xff]
    %461 = vmatprep.subr.mxu0 0.0
    %462 = vmatpush1.msra.mxu0 %v445
    %463 = vmatprep.subr.mxu0 0.0
    %464 = vmatpush1.msra.mxu0 %v446
    %465 = vmatprep.subr.mxu0 0.0
    %466 = vmatpush1.msra.mxu0 %v447
    %467 = vmatprep.subr.mxu0 0.0
    %468 = vmatpush1.msra.mxu0 %v448
    %469 = vmatprep.subr.mxu0 0.0
    %470 = vmatpush1.msra.mxu0 %v449
    %471 = vmatprep.subr.mxu0 0.0
    %472 = vmatpush1.msra.mxu0 %v450
    %473 = vmatprep.subr.mxu0 0.0
    %474 = vmatpush1.msra.mxu0 %v451
    %475 = vmatprep.subr.mxu0 0.0
    %476 = vmatpush1.msra.mxu0 %v452
    %477 = vmatprep.subr.mxu0 0.0
    %478 = vmatpush1.msra.mxu0 %v453
    %479 = vmatprep.subr.mxu0 0.0
    %480 = vmatpush1.msra.mxu0 %v454
    %481 = vmatprep.subr.mxu0 0.0
    %482 = vmatpush1.msra.mxu0 %v455
    %483 = vmatprep.subr.mxu0 0.0
    %484 = vmatpush1.msra.mxu0 %v456
    %485 = vmatprep.subr.mxu0 0.0
    %486 = vmatpush1.msra.mxu0 %v457
    %487 = vmatprep.subr.mxu0 0.0
    %488 = vmatpush1.msra.mxu0 %v458
    %489 = vmatprep.subr.mxu0 0.0
    %490 = vmatpush1.msra.mxu0 %v459
    %491 = vmatprep.subr.mxu0 0.0
    %492 = vmatpush1.msra.mxu0 %v460
    %493 = vmatprep.subr.mxu0 0.0
    %494 = vmatpush1.msra.mxu0 0.0
    %495 = vmatprep.subr.mxu0 0.0
    %496 = vmatpush1.msra.mxu0 0.0
    %497 = vmatprep.subr.mxu0 0.0
    %498 = vmatpush1.msra.mxu0 0.0
    %499 = vmatprep.subr.mxu0 0.0
    %500 = vmatpush1.msra.mxu0 0.0
    %501 = vmatprep.subr.mxu0 0.0
    %502 = vmatpush1.msra.mxu0 0.0
    %503 = vmatprep.subr.mxu0 0.0
    %504 = vmatpush1.msra.mxu0 0.0
    %505 = vmatprep.subr.mxu0 0.0
    %506 = vmatpush1.msra.mxu0 0.0
    %507 = vmatprep.subr.mxu0 0.0
    %508 = vmatpush1.msra.mxu0 0.0
    %509 = vmatprep.subr.mxu0 0.0
    %510 = vmatpush1.msra.mxu0 0.0
    %511 = vmatprep.subr.mxu0 0.0
    %512 = vmatpush1.msra.mxu0 0.0
    %513 = vmatprep.subr.mxu0 0.0
    %514 = vmatpush1.msra.mxu0 0.0
    %515 = vmatprep.subr.mxu0 0.0
    %516 = vmatpush1.msra.mxu0 0.0
    %517 = vmatprep.subr.mxu0 0.0
    %518 = vmatpush1.msra.mxu0 0.0
    %519 = vmatprep.subr.mxu0 0.0
    %520 = vmatpush1.msra.mxu0 0.0
    %521 = vmatprep.subr.mxu0 0.0
    %522 = vmatpush1.msra.mxu0 0.0
    %523 = vmatprep.subr.mxu0 0.0
    %524 = vmatpush1.msra.mxu0 0.0
    %525 = vmatprep.mubr.f32.mxu0 0.0
    %526 = vmatmul.mubr.f32.gmra.mrb[0].mxu0 %v426
    %v527 = vpop.f32.mrb[0].mxu0
    %v528 = vadd.f32 0.0, %v527
    %v529 = vpop.f32.mrb[0].mxu0
    %530 = vdwg.mxu0
    %531 = vmatprep.subr.mxu0 0.0
    %532 = vmatpush1.msra.mxu0 %v445
    %533 = vmatprep.subr.mxu0 0.0
    %534 = vmatpush1.msra.mxu0 %v446
    %535 = vmatprep.subr.mxu0 0.0
    %536 = vmatpush1.msra.mxu0 %v447
    %537 = vmatprep.subr.mxu0 0.0
    %538 = vmatpush1.msra.mxu0 %v448
    %539 = vmatprep.subr.mxu0 0.0
    %540 = vmatpush1.msra.mxu0 %v449
    %541 = vmatprep.subr.mxu0 0.0
    %542 = vmatpush1.msra.mxu0 %v450
    %543 = vmatprep.subr.mxu0 0.0
    %544 = vmatpush1.msra.mxu0 %v451
    %545 = vmatprep.subr.mxu0 0.0
    %546 = vmatpush1.msra.mxu0 %v452
    %547 = vmatprep.subr.mxu0 0.0
    %548 = vmatpush1.msra.mxu0 %v453
    %549 = vmatprep.subr.mxu0 0.0
    %550 = vmatpush1.msra.mxu0 %v454
    %551 = vmatprep.subr.mxu0 0.0
    %552 = vmatpush1.msra.mxu0 %v455
    %553 = vmatprep.subr.mxu0 0.0
    %554 = vmatpush1.msra.mxu0 %v456
    %555 = vmatprep.subr.mxu0 0.0
    %556 = vmatpush1.msra.mxu0 %v457
    %557 = vmatprep.subr.mxu0 0.0
    %558 = vmatpush1.msra.mxu0 %v458
    %559 = vmatprep.subr.mxu0 0.0
    %560 = vmatpush1.msra.mxu0 %v459
    %561 = vmatprep.subr.mxu0 0.0
    %562 = vmatpush1.msra.mxu0 %v460
    %563 = vmatprep.subr.mxu0 0.0
    %564 = vmatpush1.msra.mxu0 0.0
    %565 = vmatprep.subr.mxu0 0.0
    %566 = vmatpush1.msra.mxu0 0.0
    %567 = vmatprep.subr.mxu0 0.0
    %568 = vmatpush1.msra.mxu0 0.0
    %569 = vmatprep.subr.mxu0 0.0
    %570 = vmatpush1.msra.mxu0 0.0
    %571 = vmatprep.subr.mxu0 0.0
    %572 = vmatpush1.msra.mxu0 0.0
    %573 = vmatprep.subr.mxu0 0.0
    %574 = vmatpush1.msra.mxu0 0.0
    %575 = vmatprep.subr.mxu0 0.0
    %576 = vmatpush1.msra.mxu0 0.0
    %577 = vmatprep.subr.mxu0 0.0
    %578 = vmatpush1.msra.mxu0 0.0
    %579 = vmatprep.subr.mxu0 0.0
    %580 = vmatpush1.msra.mxu0 0.0
    %581 = vmatprep.subr.mxu0 0.0
    %582 = vmatpush1.msra.mxu0 0.0
    %583 = vmatprep.subr.mxu0 0.0
    %584 = vmatpush1.msra.mxu0 0.0
    %585 = vmatprep.subr.mxu0 0.0
    %586 = vmatpush1.msra.mxu0 0.0
    %587 = vmatprep.subr.mxu0 0.0
    %588 = vmatpush1.msra.mxu0 0.0
    %589 = vmatprep.subr.mxu0 0.0
    %590 = vmatpush1.msra.mxu0 0.0
    %591 = vmatprep.subr.mxu0 0.0
    %592 = vmatpush1.msra.mxu0 0.0
    %593 = vmatprep.subr.mxu0 0.0
    %594 = vmatpush1.msra.mxu0 0.0
    %595 = vmatprep.mubr.f32.mxu0 0.0
    %596 = vmatmul.mubr.f32.gmra.mrb[0].mxu0 %v440
    %v597 = vpop.f32.mrb[0].mxu0
    %v598 = vadd.f32 0.0, %v597
    %v599 = vpop.f32.mrb[0].mxu0
    %600 = vdwg.mxu0
    %v601 = vmul.f32 %v528, 0.001953125
    %v602 = vmul.f32 %v598, 0.001953125
    %v603 = vmul.f32 %v601, %v601
    %v604 = vsub.f32 %v602, %v603
    %v605 = vmax.f32 %v604, 0.0
    %v606 = vld [vmem:[%s3] sm:$0x1]
    %v607 = vld [vmem:[%s3 + $0x1] sm:$0x1]
    %v608 = vadd.f32 %v605, 1e-05
    %v609 = vrsqrt.pop %v608
    %v610 = vmul.f32 %v606, %v609
    %v611 = vmul.f32 %v601, %v610
    %v612 = vsub.f32 %v607, %v611
    %v613 = vld [vmem:[#allocation8] sm:$0xff]
    %v614 = vld [vmem:[#allocation8 + $0x8] sm:$0xff]
    %v615 = vld [vmem:[#allocation8 + $0x10] sm:$0xff]
    %v616 = vld [vmem:[#allocation8 + $0x18] sm:$0xff]
    %v617 = vlaneseq
    %v618 = vshrl.u32 %v617, 7
    %v619 = vsub.s32 0, %v618
    %v620 = vrot.slane %v610, %v619
    %v621 = vmul.f32 %v613, %v620
    %v622 = vmul.f32 %v614, %v620
    %v623 = vmul.f32 %v615, %v620
    %v624 = vmul.f32 %v616, %v620
    %v625 = vlaneseq
    %v626 = vshrl.u32 %v625, 7
    %v627 = vsub.s32 0, %v626
    %v628 = vrot.slane %v612, %v627
    %v629 = vadd.f32 %v621, %v628
    %v630 = vadd.f32 %v622, %v628
    %v631 = vadd.f32 %v623, %v628
    %v632 = vadd.f32 %v624, %v628
    %vm633 = vcmp.gt.f32.partialorder %v629, 0.0
    %vm634 = vcmp.gt.f32.partialorder %v630, 0.0
    %vm635 = vcmp.gt.f32.partialorder %v631, 0.0
    %vm636 = vcmp.gt.f32.partialorder %v632, 0.0
    %v637 = vmul.f32 %v629, 0.01
    %v638 = vmul.f32 %v630, 0.01
    %v639 = vmul.f32 %v631, 0.01
    %v640 = vmul.f32 %v632, 0.01
    %v641 = vsel %vm633, %v629, %v637
    %v642 = vsel %vm634, %v630, %v638
    %v643 = vsel %vm635, %v631, %v639
    %v644 = vsel %vm636, %v632, %v640
    %645 = vst [vmem:[#allocation8] sm:$0xff] %v641
    %646 = vst [vmem:[#allocation8 + $0x8] sm:$0xff] %v642
    %647 = vst [vmem:[#allocation8 + $0x10] sm:$0xff] %v643
    %648 = vst [vmem:[#allocation8 + $0x18] sm:$0xff] %v644
    // Predicated region
    $region30: #{tpu_custom_call.1} parent=1 // pred_check
      _
    $region31: #{tpu_custom_call.1} parent=1 // pred_check_branch
      %650 = sbr.rel (0) target = $region33
    $region32: #{tpu_custom_call.1} parent=1 // pred_region
      %s652 = ssub.s32 512, 512
      %653 = vsyncadd [#allocation4], %s652
      %s654 = sshll.u32 [#allocation8], 4
      %s655 = int_to_ptr.vmem [resolvable:$true] %s654
      %660 = dma.vmem_to_hbm [thread:$0]  %s655, 512, %s4, [#allocation4], 128, 128, 8
    $region33: #{tpu_custom_call.1} parent=1 // pred_fallthru
      _
    // Predicated region
    $region34: #{tpu_custom_call.1} parent=1 // pred_check
      _
    $region35: #{tpu_custom_call.1} parent=1 // pred_check_branch
      %662 = sbr.rel (0) target = $region37
    $region36: #{tpu_custom_call.1} parent=1 // pred_region
      %663 = dma.done [#allocation4], 512
    $region37: #{tpu_custom_call.1} parent=1 // pred_fallthru
      _
    %664 = vsyncpa [#allocation3], 1
    %665 = vsyncpa [#allocation6], 1
    %666 = vsyncpa [#allocation4], 1

</llo_original>
